<compile_context>
chip_gen: v6e
topology: v6e:2x2x1
jax: 0.10.0
libtpu: 0.0.40
codegen_flags: <defaults>
</compile_context>

<pallas_src>
import functools

import jax
import jax.numpy as jnp
from jax import lax
from jax.experimental import pallas as pl
from jax.experimental.pallas import tpu as pltpu

_SMOOTH = 1e-5     # BinaryDiceLoss smooth
_LANE = 128        # fixed lane width: keeps the sublane (row) axis well filled for any D


def _vmem_limit_bytes():
    """Generation-aware scoped-VMEM request (~75% of per-core VMEM, capped)."""
    cap = None
    try:
        cap = int(getattr(pltpu.get_tpu_info(), "vmem_capacity_bytes", 0)) or None
    except Exception:
        cap = None
    if cap is None:
        return 48 << 20            # safe on v5e/v6e (128 MiB) and v7x (64 MiB per TC)
    return max(32 << 20, min((cap * 3) // 4, 96 << 20))


def _largest_divisor_leq(n, cap):
    cap = max(1, min(n, cap))
    for b in range(cap, 0, -1):
        if n % b == 0:
            return b
    return 1


def _make_kernel(bt, ts, ar, s_rows, nj_seg, binary_target, needs_mask):
    folds = ts // ar

    def kernel(pred_ref, tgt_ref, bce_out_ref, num_out_ref, den_out_ref,
               bce_acc, num_acc, den_acc):
        j = pl.program_id(2)

        @pl.when(j == 0)
        def _init():
            bce_acc[...] = jnp.zeros_like(bce_acc)
            num_acc[...] = jnp.zeros_like(num_acc)
            den_acc[...] = jnp.zeros_like(den_acc)

        p = pred_ref[...].astype(jnp.float32)      # (BT, TS, 128)
        t = tgt_ref[...].astype(jnp.float32)

        if needs_mask:
            # Ragged tail of the reduction axis: out-of-range block rows hold undefined data,
            # so zero p/t there before any arithmetic (selected-away values never propagate).
            chunk = pl.program_id(1) * nj_seg + j
            rows = lax.broadcasted_iota(jnp.int32, (1, ts, _LANE), 1) + chunk * ts
            valid = rows < s_rows
            p = jnp.where(valid, p, 0.0)
            t = jnp.where(valid, t, 0.0)

        if binary_target:
            # Exact for t in {0,1}:  -(t*log p + (1-t)*log(1-p)) == -log(t ? p : 1-p)  and
            # t**2 == t.  Accumulate +max(log, -100); the single negation happens in the
            # wrapper.  Padded/masked elements (p=0, t=0) contribute log(1) = 0.
            sel = jnp.where(t > 0.5, p, 1.0 - p)
            bce_term = jnp.maximum(jnp.log(sel), -100.0)
            den_term = p * p + t
        else:
            # Guard path for soft / non-binary targets: exact nn.BCELoss formula + p^2 + t^2.
            bce_term = (t * jnp.maximum(jnp.log(p), -100.0)
                        + (1.0 - t) * jnp.maximum(jnp.log(1.0 - p), -100.0))
            den_term = p * p + t * t

        def fold(x):
            # (BT, TS, 128) -> (BT, AR, 128): layout-preserving sublane fold -> pure
            # vreg-aligned VALU adds; no per-chunk cross-sublane (XLU) collapse.
            if folds > 1:
                x = x.reshape(bt, folds, ar, _LANE).sum(axis=1)
            return x

        bce_acc[...] += fold(bce_term)
        num_acc[...] += fold(p * t)
        den_acc[...] += fold(den_term)

        @pl.when(j == nj_seg - 1)
        def _finalize():
            # Emit lane-dense raw sums; the scalar math runs in the JAX wrapper.
            bce_out_ref[...] = jnp.sum(bce_acc[...], axis=1)[:, None, None, :]
            num_out_ref[...] = jnp.sum(num_acc[...], axis=1)[:, None, None, :]
            den_out_ref[...] = jnp.sum(den_acc[...], axis=1)[:, None, None, :]

    return kernel


def bce_dice_loss(predict, target, *, binary_target=True, max_tile_elems=None):
    """BCE_Dice_Loss forward.

    predict: [N, 1, H, W] probabilities in [0, 1]; target: [N, H, W].
    binary_target=True assumes targets are exactly {0, 1} (as BinaryDiceLoss implies) and uses
    the cheaper single-log / t**2 == t form; pass binary_target=False for soft targets to get
    the exact two-log nn.BCELoss formula.  Returns a float32 scalar.
    """
    n, c, h, w = predict.shape
    if c != 1 or tuple(target.shape) != (n, h, w):
        raise ValueError(
            "nn.BCELoss requires predict.shape == target.unsqueeze(1).shape (so C must be 1); "
            f"got predict {predict.shape}, target {target.shape}")
    d = c * h * w

    limit = _vmem_limit_bytes()
    if max_tile_elems is None:
        tile_elems = (1 << 20) if limit >= (40 << 20) else (512 * 1024)
    else:
        tile_elems = max(256, int(max_tile_elems))

    # Lane-dense view: each batch row of D elements becomes (S, 128).  Inputs stay in their
    # native dtype in HBM; the f32 up-cast happens in-kernel.
    pred2 = predict.reshape(n, d)
    tgt2 = target.reshape(n, d)
    d_pad = d
    if d % _LANE != 0:
        # TODO(synk): replace this HBM pad copy with an in-kernel lane mask on a flat (n,1,d)
        # view for spatial sizes that are not multiples of 128.
        d_pad = ((d + _LANE - 1) // _LANE) * _LANE
        pred2 = jnp.pad(pred2, ((0, 0), (0, d_pad - d)))
        tgt2 = jnp.pad(tgt2, ((0, 0), (0, d_pad - d)))
    s = d_pad // _LANE
    pred3 = pred2.reshape(n, s, _LANE)
    tgt3 = tgt2.reshape(n, s, _LANE)

    # Blocking: pack whole rows (and several batch rows) per grid step when they fit the tile
    # budget; otherwise chunk the per-row reduction axis.
    budget_rows = max(8, (tile_elems // _LANE) // 8 * 8)
    if s <= budget_rows:
        ts = s
        ar = 8 if ts % 8 == 0 else ts
        bt_cap = min(256, max(1, tile_elems // (s * _LANE)))
        bt_cap = min(bt_cap, max(1, (256 * 1024) // (ar * _LANE)))   # keep accumulators small
        bt = _largest_divisor_leq(n, bt_cap)
    else:
        ts = budget_rows
        if ts >= 32:
            ts -= ts % 32      # keep packed-dtype (bf16/int8) sublane tiling legal
        ar = 8
        bt = 1
    nb = n // bt
    nj_total = -(-s // ts)     # chunks along the per-row reduction axis

    # Split the reduction into 2 'parallel' segments when the batch axis alone can't feed both
    # v7x TensorCores; neutral on single-core v5e/v6e (raw sums are re-combined in the wrapper).
    r_split = 2 if (nb % 2 == 1 and nj_total >= 8) else 1
    nj_seg = -(-nj_total // r_split)
    needs_mask = (nj_seg * r_split * ts != s)

    def in_map(i, r, j):
        # Clamp so dead / ragged chunk indices never issue an out-of-range block DMA; their
        # contribution is zeroed by the in-kernel row mask.
        return (i, jnp.minimum(r * nj_seg + j, nj_total - 1), 0)

    out_struct = jax.ShapeDtypeStruct((n, r_split, 1, _LANE), jnp.float32)
    out_spec = pl.BlockSpec((bt, 1, 1, _LANE), lambda i, r, j: (i, r, 0, 0))

    kernel = _make_kernel(bt, ts, ar, s, nj_seg, binary_target, needs_mask)

    out_bce, out_num, out_den = pl.pallas_call(
        kernel,
        out_shape=(out_struct, out_struct, out_struct),
        grid=(nb, r_split, nj_seg),
        in_specs=[
            pl.BlockSpec((bt, ts, _LANE), in_map),
            pl.BlockSpec((bt, ts, _LANE), in_map),
        ],
        out_specs=(out_spec, out_spec, out_spec),
        scratch_shapes=[
            pltpu.VMEM((bt, ar, _LANE), jnp.float32),   # + clamped-log partial sums
            pltpu.VMEM((bt, ar, _LANE), jnp.float32),   # sum(p * t) partials
            pltpu.VMEM((bt, ar, _LANE), jnp.float32),   # sum(p**2 + t**2) partials
        ],
        compiler_params=pltpu.CompilerParams(
            dimension_semantics=("parallel", "parallel", "arbitrary"),
            vmem_limit_bytes=limit,
        ),
        cost_estimate=pl.CostEstimate(
            flops=(10 if binary_target else 14) * n * s * _LANE,
            transcendentals=(1 if binary_target else 2) * n * s * _LANE,
            bytes_accessed=(pred3.size * pred3.dtype.itemsize
                            + tgt3.size * tgt3.dtype.itemsize
                            + 3 * n * r_split * _LANE * 4),
        ),
    )(pred3, tgt3)

    # Tiny final reduction / scalar math in plain JAX (the kernel emits raw sums only).
    bce_sum = jnp.sum(out_bce)                        # sum over batch, segments, lanes
    num = jnp.sum(out_num, axis=(1, 2, 3))            # (N,)
    den = jnp.sum(out_den, axis=(1, 2, 3))            # (N,)
    bce = -bce_sum / float(n * d)                     # BCELoss 'mean' over the true element count
    dice = jnp.mean(1.0 - (num + _SMOOTH) / (den + _SMOOTH))
    return bce + dice


if __name__ == "__main__":
    key = jax.random.PRNGKey(0)

    def reference(predict, target):
        nb_ = predict.shape[0]
        p = predict.reshape(nb_, -1).astype(jnp.float32)
        t = target.reshape(nb_, -1).astype(jnp.float32)
        bce = -jnp.mean(t * jnp.maximum(jnp.log(p), -100.0)
                        + (1.0 - t) * jnp.maximum(jnp.log(1.0 - p), -100.0))
        num = jnp.sum(p * t, axis=1) + _SMOOTH
        den = jnp.sum(p * p + t * t, axis=1) + _SMOOTH
        return bce + jnp.mean(1.0 - num / den)

    def check(loss, ref, name):
        loss = float(loss)
        ref = float(ref)
        assert abs(loss - ref) <= 1e-4 * max(1.0, abs(ref)), (name, loss, ref)

    # 1) canonical small shape: predict [2,1,16,16] probabilities, binary target [2,16,16]
    k1, k2 = jax.random.split(key)
    N, C, H, W = 2, 1, 16, 16
    predict = jax.nn.sigmoid(jax.random.normal(k1, (N, C, H, W), jnp.float32))
    target = (jax.random.uniform(k2, (N, H, W)) > 0.5).astype(jnp.float32)
    loss = jax.jit(bce_dice_loss)(predict, target)
    jax.block_until_ready(loss)
    check(loss, reference(predict, target), "base")

    # 2) chunked reduction + 2-way parallel split of the S axis + ragged-tail masking
    #    (small tile budget forces multiple reduction steps at a small problem size)
    k3, k4 = jax.random.split(k1)
    p2 = jax.nn.sigmoid(jax.random.normal(k3, (1, 1, 120, 128), jnp.float32))
    t2 = (jax.random.uniform(k4, (1, 120, 128)) > 0.5).astype(jnp.float32)
    loss2 = jax.jit(functools.partial(bce_dice_loss, max_tile_elems=2048))(p2, t2)
    jax.block_until_ready(loss2)
    check(loss2, reference(p2, t2), "chunked")

    # 3) spatial size not a multiple of 128 (padded fallback path)
    k5, k6 = jax.random.split(k2)
    p3 = jax.nn.sigmoid(jax.random.normal(k5, (2, 1, 10, 10), jnp.float32))
    t3 = (jax.random.uniform(k6, (2, 10, 10)) > 0.5).astype(jnp.float32)
    loss3 = jax.jit(bce_dice_loss)(p3, t3)
    jax.block_until_ready(loss3)
    check(loss3, reference(p3, t3), "pad")

    # 4) soft (non-binary) targets via the exact-BCE guard path
    k7, k8 = jax.random.split(k3)
    p4 = jax.nn.sigmoid(jax.random.normal(k7, (2, 1, 16, 16), jnp.float32))
    t4 = jax.random.uniform(k8, (2, 16, 16), dtype=jnp.float32)
    loss4 = jax.jit(functools.partial(bce_dice_loss, binary_target=False))(p4, t4)
    jax.block_until_ready(loss4)
    check(loss4, reference(p4, t4), "soft")

    print("KERNEL_OK")
</pallas_src>

<mosaic_0001>
module attributes {stable_mosaic.version = 11 : i64} {
  func.func @kernel(%arg0: i32, %arg1: i32, %arg2: i32, %arg3: memref<2x2x128xf32, #tpu.memory_space<vmem>>, %arg4: memref<2x2x128xf32, #tpu.memory_space<vmem>>, %arg5: memref<2x1x1x128xf32, #tpu.memory_space<vmem>>, %arg6: memref<2x1x1x128xf32, #tpu.memory_space<vmem>>, %arg7: memref<2x1x1x128xf32, #tpu.memory_space<vmem>>, %arg8: memref<2x2x128xf32, #tpu.memory_space<vmem>>, %arg9: memref<2x2x128xf32, #tpu.memory_space<vmem>>, %arg10: memref<2x2x128xf32, #tpu.memory_space<vmem>>) attributes {dimension_semantics = [#tpu.dimension_semantics<parallel>, #tpu.dimension_semantics<parallel>, #tpu.dimension_semantics<arbitrary>], iteration_bounds = array<i64: 1, 1, 1>, scalar_prefetch = 0 : i64, scratch_operands = 3 : i64, tpu.core_type = #tpu.core_type<tc>, window_params = [{transform_indices = @transform_0, window_bounds = array<i64: 2, 2, 128>}, {transform_indices = @transform_1, window_bounds = array<i64: 2, 2, 128>}, {transform_indices = @transform_2, window_bounds = array<i64: 2, 1, 1, 128>}, {transform_indices = @transform_3, window_bounds = array<i64: 2, 1, 1, 128>}, {transform_indices = @transform_4, window_bounds = array<i64: 2, 1, 1, 128>}]} {
    %c0_i32 = arith.constant 0 : i32
    %0 = arith.cmpi eq, %arg2, %c0_i32 : i32
    %1 = arith.extui %0 : i1 to i32
    %c0_i32_0 = arith.constant 0 : i32
    %2 = arith.cmpi ne, %1, %c0_i32_0 : i32
    scf.if %2 {
      %cst_28 = arith.constant 0.000000e+00 : f32
      %28 = vector.broadcast %cst_28 : f32 to vector<2x2x128xf32>
      %c0_29 = arith.constant 0 : index
      %c0_30 = arith.constant 0 : index
      %c0_31 = arith.constant 0 : index
      %29 = vector.load %arg8[%c0_29, %c0_30, %c0_31] : memref<2x2x128xf32, #tpu.memory_space<vmem>>, vector<2x2x128xf32>
      tpu.vector_store %arg8[%c0_29, %c0_30, %c0_31], %28 {strides = array<i32>} : memref<2x2x128xf32, #tpu.memory_space<vmem>>, vector<2x2x128xf32>,
      %cst_32 = arith.constant 0.000000e+00 : f32
      %30 = vector.broadcast %cst_32 : f32 to vector<2x2x128xf32>
      %c0_33 = arith.constant 0 : index
      %c0_34 = arith.constant 0 : index
      %c0_35 = arith.constant 0 : index
      %31 = vector.load %arg9[%c0_33, %c0_34, %c0_35] : memref<2x2x128xf32, #tpu.memory_space<vmem>>, vector<2x2x128xf32>
      tpu.vector_store %arg9[%c0_33, %c0_34, %c0_35], %30 {strides = array<i32>} : memref<2x2x128xf32, #tpu.memory_space<vmem>>, vector<2x2x128xf32>,
      %cst_36 = arith.constant 0.000000e+00 : f32
      %32 = vector.broadcast %cst_36 : f32 to vector<2x2x128xf32>
      %c0_37 = arith.constant 0 : index
      %c0_38 = arith.constant 0 : index
      %c0_39 = arith.constant 0 : index
      %33 = vector.load %arg10[%c0_37, %c0_38, %c0_39] : memref<2x2x128xf32, #tpu.memory_space<vmem>>, vector<2x2x128xf32>
      tpu.vector_store %arg10[%c0_37, %c0_38, %c0_39], %32 {strides = array<i32>} : memref<2x2x128xf32, #tpu.memory_space<vmem>>, vector<2x2x128xf32>,
    } else {
    }
    %c0 = arith.constant 0 : index
    %c0_1 = arith.constant 0 : index
    %c0_2 = arith.constant 0 : index
    %3 = vector.load %arg3[%c0, %c0_1, %c0_2] : memref<2x2x128xf32, #tpu.memory_space<vmem>>, vector<2x2x128xf32>
    %c0_3 = arith.constant 0 : index
    %c0_4 = arith.constant 0 : index
    %c0_5 = arith.constant 0 : index
    %4 = vector.load %arg4[%c0_3, %c0_4, %c0_5] : memref<2x2x128xf32, #tpu.memory_space<vmem>>, vector<2x2x128xf32>
    %cst = arith.constant 5.000000e-01 : f32
    %5 = vector.broadcast %cst : f32 to vector<2x2x128xf32>
    %6 = arith.cmpf ogt, %4, %5 : vector<2x2x128xf32>
    %cst_6 = arith.constant 1.000000e+00 : f32
    %7 = vector.broadcast %cst_6 : f32 to vector<2x2x128xf32>
    %8 = arith.subf %7, %3 : vector<2x2x128xf32>
    %9 = arith.select %6, %3, %8 : vector<2x2x128xi1>, vector<2x2x128xf32>
    %10 = math.log %9 : vector<2x2x128xf32>
    %cst_7 = arith.constant -1.000000e+02 : f32
    %11 = vector.broadcast %cst_7 : f32 to vector<2x2x128xf32>
    %12 = arith.maximumf %10, %11 : vector<2x2x128xf32>
    %13 = arith.mulf %3, %3 : vector<2x2x128xf32>
    %14 = arith.addf %13, %4 : vector<2x2x128xf32>
    %c0_8 = arith.constant 0 : index
    %c0_9 = arith.constant 0 : index
    %c0_10 = arith.constant 0 : index
    %15 = vector.load %arg8[%c0_8, %c0_9, %c0_10] : memref<2x2x128xf32, #tpu.memory_space<vmem>>, vector<2x2x128xf32>
    %16 = arith.addf %15, %12 : vector<2x2x128xf32>
    %c0_11 = arith.constant 0 : index
    %c0_12 = arith.constant 0 : index
    %c0_13 = arith.constant 0 : index
    %17 = vector.load %arg8[%c0_11, %c0_12, %c0_13] : memref<2x2x128xf32, #tpu.memory_space<vmem>>, vector<2x2x128xf32>
    tpu.vector_store %arg8[%c0_11, %c0_12, %c0_13], %16 {strides = array<i32>} : memref<2x2x128xf32, #tpu.memory_space<vmem>>, vector<2x2x128xf32>,
    %c0_14 = arith.constant 0 : index
    %c0_15 = arith.constant 0 : index
    %c0_16 = arith.constant 0 : index
    %18 = vector.load %arg9[%c0_14, %c0_15, %c0_16] : memref<2x2x128xf32, #tpu.memory_space<vmem>>, vector<2x2x128xf32>
    %19 = arith.mulf %3, %4 : vector<2x2x128xf32>
    %20 = arith.addf %18, %19 : vector<2x2x128xf32>
    %c0_17 = arith.constant 0 : index
    %c0_18 = arith.constant 0 : index
    %c0_19 = arith.constant 0 : index
    %21 = vector.load %arg9[%c0_17, %c0_18, %c0_19] : memref<2x2x128xf32, #tpu.memory_space<vmem>>, vector<2x2x128xf32>
    tpu.vector_store %arg9[%c0_17, %c0_18, %c0_19], %20 {strides = array<i32>} : memref<2x2x128xf32, #tpu.memory_space<vmem>>, vector<2x2x128xf32>,
    %c0_20 = arith.constant 0 : index
    %c0_21 = arith.constant 0 : index
    %c0_22 = arith.constant 0 : index
    %22 = vector.load %arg10[%c0_20, %c0_21, %c0_22] : memref<2x2x128xf32, #tpu.memory_space<vmem>>, vector<2x2x128xf32>
    %23 = arith.addf %22, %14 : vector<2x2x128xf32>
    %c0_23 = arith.constant 0 : index
    %c0_24 = arith.constant 0 : index
    %c0_25 = arith.constant 0 : index
    %24 = vector.load %arg10[%c0_23, %c0_24, %c0_25] : memref<2x2x128xf32, #tpu.memory_space<vmem>>, vector<2x2x128xf32>
    tpu.vector_store %arg10[%c0_23, %c0_24, %c0_25], %23 {strides = array<i32>} : memref<2x2x128xf32, #tpu.memory_space<vmem>>, vector<2x2x128xf32>,
    %c0_i32_26 = arith.constant 0 : i32
    %25 = arith.cmpi eq, %arg2, %c0_i32_26 : i32
    %26 = arith.extui %25 : i1 to i32
    %c0_i32_27 = arith.constant 0 : i32
    %27 = arith.cmpi ne, %26, %c0_i32_27 : i32
    scf.if %27 {
      %c0_28 = arith.constant 0 : index
      %c0_29 = arith.constant 0 : index
      %c0_30 = arith.constant 0 : index
      %28 = vector.load %arg8[%c0_28, %c0_29, %c0_30] : memref<2x2x128xf32, #tpu.memory_space<vmem>>, vector<2x2x128xf32>
      %cst_31 = arith.constant dense<0.000000e+00> : vector<2x128xf32>
      %29 = vector.multi_reduction <add>, %28, %cst_31 [1] : vector<2x2x128xf32> to vector<2x128xf32>
      %30 = vector.shape_cast %29 : vector<2x128xf32> to vector<2x1x1x128xf32>
      %c0_32 = arith.constant 0 : index
      %c0_33 = arith.constant 0 : index
      %c0_34 = arith.constant 0 : index
      %c0_35 = arith.constant 0 : index
      %31 = vector.load %arg5[%c0_32, %c0_33, %c0_34, %c0_35] : memref<2x1x1x128xf32, #tpu.memory_space<vmem>>, vector<2x1x1x128xf32>
      tpu.vector_store %arg5[%c0_32, %c0_33, %c0_34, %c0_35], %30 {strides = array<i32>} : memref<2x1x1x128xf32, #tpu.memory_space<vmem>>, vector<2x1x1x128xf32>,
      %c0_36 = arith.constant 0 : index
      %c0_37 = arith.constant 0 : index
      %c0_38 = arith.constant 0 : index
      %32 = vector.load %arg9[%c0_36, %c0_37, %c0_38] : memref<2x2x128xf32, #tpu.memory_space<vmem>>, vector<2x2x128xf32>
      %cst_39 = arith.constant dense<0.000000e+00> : vector<2x128xf32>
      %33 = vector.multi_reduction <add>, %32, %cst_39 [1] : vector<2x2x128xf32> to vector<2x128xf32>
      %34 = vector.shape_cast %33 : vector<2x128xf32> to vector<2x1x1x128xf32>
      %c0_40 = arith.constant 0 : index
      %c0_41 = arith.constant 0 : index
      %c0_42 = arith.constant 0 : index
      %c0_43 = arith.constant 0 : index
      %35 = vector.load %arg6[%c0_40, %c0_41, %c0_42, %c0_43] : memref<2x1x1x128xf32, #tpu.memory_space<vmem>>, vector<2x1x1x128xf32>
      tpu.vector_store %arg6[%c0_40, %c0_41, %c0_42, %c0_43], %34 {strides = array<i32>} : memref<2x1x1x128xf32, #tpu.memory_space<vmem>>, vector<2x1x1x128xf32>,
      %c0_44 = arith.constant 0 : index
      %c0_45 = arith.constant 0 : index
      %c0_46 = arith.constant 0 : index
      %36 = vector.load %arg10[%c0_44, %c0_45, %c0_46] : memref<2x2x128xf32, #tpu.memory_space<vmem>>, vector<2x2x128xf32>
      %cst_47 = arith.constant dense<0.000000e+00> : vector<2x128xf32>
      %37 = vector.multi_reduction <add>, %36, %cst_47 [1] : vector<2x2x128xf32> to vector<2x128xf32>
      %38 = vector.shape_cast %37 : vector<2x128xf32> to vector<2x1x1x128xf32>
      %c0_48 = arith.constant 0 : index
      %c0_49 = arith.constant 0 : index
      %c0_50 = arith.constant 0 : index
      %c0_51 = arith.constant 0 : index
      %39 = vector.load %arg7[%c0_48, %c0_49, %c0_50, %c0_51] : memref<2x1x1x128xf32, #tpu.memory_space<vmem>>, vector<2x1x1x128xf32>
      tpu.vector_store %arg7[%c0_48, %c0_49, %c0_50, %c0_51], %38 {strides = array<i32>} : memref<2x1x1x128xf32, #tpu.memory_space<vmem>>, vector<2x1x1x128xf32>,
    } else {
    }
    return
  }
  func.func @transform_0(%arg0: i32, %arg1: i32, %arg2: i32) -> (i32, i32, i32) {
    %c1_i32 = arith.constant 1 : i32
    %0 = arith.muli %arg1, %c1_i32 : i32
    %1 = arith.addi %0, %arg2 : i32
    %c0_i32 = arith.constant 0 : i32
    %2 = arith.minsi %1, %c0_i32 : i32
    %c0_i32_0 = arith.constant 0 : i32
    %c0_i32_1 = arith.constant 0 : i32
    return %arg0, %2, %c0_i32_0 : i32, i32, i32
  }
  func.func @transform_1(%arg0: i32, %arg1: i32, %arg2: i32) -> (i32, i32, i32) {
    %c1_i32 = arith.constant 1 : i32
    %0 = arith.muli %arg1, %c1_i32 : i32
    %1 = arith.addi %0, %arg2 : i32
    %c0_i32 = arith.constant 0 : i32
    %2 = arith.minsi %1, %c0_i32 : i32
    %c0_i32_0 = arith.constant 0 : i32
    %c0_i32_1 = arith.constant 0 : i32
    return %arg0, %2, %c0_i32_0 : i32, i32, i32
  }
  func.func @transform_2(%arg0: i32, %arg1: i32, %arg2: i32) -> (i32, i32, i32, i32) {
    %c0_i32 = arith.constant 0 : i32
    %c0_i32_0 = arith.constant 0 : i32
    %c0_i32_1 = arith.constant 0 : i32
    return %arg0, %arg1, %c0_i32, %c0_i32_0 : i32, i32, i32, i32
  }
  func.func @transform_3(%arg0: i32, %arg1: i32, %arg2: i32) -> (i32, i32, i32, i32) {
    %c0_i32 = arith.constant 0 : i32
    %c0_i32_0 = arith.constant 0 : i32
    %c0_i32_1 = arith.constant 0 : i32
    return %arg0, %arg1, %c0_i32, %c0_i32_0 : i32, i32, i32, i32
  }
  func.func @transform_4(%arg0: i32, %arg1: i32, %arg2: i32) -> (i32, i32, i32, i32) {
    %c0_i32 = arith.constant 0 : i32
    %c0_i32_0 = arith.constant 0 : i32
    %c0_i32_1 = arith.constant 0 : i32
    return %arg0, %arg1, %c0_i32, %c0_i32_0 : i32, i32, i32, i32
  }
}

</mosaic_0001>

<llo_original>
// kernel: bce_dice_loss.1
$region0: #{bce_dice_loss.1}
  #allocation0 [shape = 'u32[]', space=smem, size = 0x4, offset = 0x4, fixed_abs, tag = 'smem constant byte address 0x4 - core index']
  #allocation1 [shape = 'u32[144,128]{1,0:T(1,128)}', space=vmem, size = 0x12000, scoped, tag = 'internal scratch']
  #allocation2 [shape = 'f32[2,2,128]{2,1,0:T(2,128)}', space=vmem, size = 0x800, scoped, tag = 'scratch operand']
  #allocation3 [shape = 'f32[2,2,128]{2,1,0:T(2,128)}', space=vmem, size = 0x800, scoped, tag = 'scratch operand']
  #allocation4 [shape = 'f32[2,2,128]{2,1,0:T(2,128)}', space=vmem, size = 0x800, scoped, tag = 'scratch operand']
  %s0 = inlined_call_operand.vmem [shape: f32[2,2,128], index: 0, kind: input, shape index: {}]
  %s1 = inlined_call_operand.vmem [shape: f32[2,2,128], index: 1, kind: input, shape index: {}]
  %s2 = inlined_call_operand.vmem [shape: f32[2,1,1,128], index: 2, kind: output, shape index: {0}]
  %s3 = inlined_call_operand.vmem [shape: f32[2,1,1,128], index: 3, kind: output, shape index: {1}]
  %s4 = inlined_call_operand.vmem [shape: f32[2,1,1,128], index: 4, kind: output, shape index: {2}]
  %5 = xla_tuple %s2, %s3, %s4
  %s6 = sld [smem:[#allocation0]]
  $region42: #{bce_dice_loss.1} parent=0
    _
  %s8 = ssub.s32 1, %s6
  %s9 = scalar_select 0, %s8, %s6
  // Predicated region
  $region2: #{bce_dice_loss.1} parent=0 // pred_check
    _
  $region3: #{bce_dice_loss.1} parent=0 // pred_check_branch
    %11 = sbr.rel (0) target = $region5
  $region4: #{bce_dice_loss.1} parent=0 // pred_region
    %s12 = sadd.s32 0, 0
    %p13 = scmp.lt.s32.totalorder %s12, 0
    %s14 = scalar_select %p13, %s12, 0
    %p15 = scmp.lt.s32.totalorder %s14, 0
    %s16 = scalar_select %p15, %s14, 0
    %s17 = smul.addr %s16, 2
    %s18 = scalar_lea.vmem %s0, %s17
    %s19 = sadd.s32 0, 0
    %p20 = scmp.lt.s32.totalorder %s19, 0
    %s21 = scalar_select %p20, %s19, 0
  $region5: #{bce_dice_loss.1} parent=0 // pred_fallthru
    _
  // Predicated region
  $region6: #{bce_dice_loss.1} parent=0 // pred_check
    _
  $region7: #{bce_dice_loss.1} parent=0 // pred_check_branch
    %23 = sbr.rel (0) target = $region9
  $region8: #{bce_dice_loss.1} parent=0 // pred_region
    %s24 = sadd.s32 0, 0
    %p25 = scmp.lt.s32.totalorder %s24, 0
    %s26 = scalar_select %p25, %s24, 0
    %p27 = scmp.lt.s32.totalorder %s26, 0
    %s28 = scalar_select %p27, %s26, 0
    %s29 = smul.addr %s28, 2
    %s30 = scalar_lea.vmem %s1, %s29
    %s31 = sadd.s32 0, 0
    %p32 = scmp.lt.s32.totalorder %s31, 0
    %s33 = scalar_select %p32, %s31, 0
  $region9: #{bce_dice_loss.1} parent=0 // pred_fallthru
    _
  %s34 = sadd.s32 0, 0
  %p35 = scmp.lt.s32.totalorder %s34, 0
  %s36 = scalar_select %p35, %s34, 0
  %p37 = scmp.lt.s32.totalorder %s36, 0
  %s38 = scalar_select %p37, %s36, 0
  %s39 = smul.addr %s38, 2
  %s40 = scalar_lea.vmem %s0, %s39
  %s41 = sadd.s32 0, 0
  %p42 = scmp.lt.s32.totalorder %s41, 0
  %s43 = scalar_select %p42, %s41, 0
  %p44 = scmp.lt.s32.totalorder %s43, 0
  %s45 = scalar_select %p44, %s43, 0
  %s46 = smul.addr %s45, 2
  %s47 = scalar_lea.vmem %s1, %s46
  %s48 = sadd.s32 0, 0
  %p49 = scmp.lt.s32.totalorder %s48, 0
  %s50 = scalar_select %p49, %s48, 0
  %p51 = scmp.lt.s32.totalorder %s50, 0
  %s52 = scalar_select %p51, %s50, 0
  %s53 = smul.addr %s52, 2
  %s54 = scalar_lea.vmem %s0, %s53
  %s55 = sadd.s32 0, 0
  %p56 = scmp.lt.s32.totalorder %s55, 0
  %s57 = scalar_select %p56, %s55, 0
  %s58 = sadd.s32 0, 0
  %p59 = scmp.lt.s32.totalorder %s58, 0
  %s60 = scalar_select %p59, %s58, 0
  %p61 = scmp.lt.s32.totalorder %s60, 0
  %s62 = scalar_select %p61, %s60, 0
  %s63 = smul.addr %s62, 2
  %s64 = scalar_lea.vmem %s1, %s63
  %s65 = sadd.s32 0, 0
  %p66 = scmp.lt.s32.totalorder %s65, 0
  %s67 = scalar_select %p66, %s65, 0
  %p68 = scmp.eq.s32.totalorder 0, 0
  // Predicated region
  $region10: #{bce_dice_loss.1} parent=0 // pred_check
    %p69 = pneg %p68
  $region11: #{bce_dice_loss.1} parent=0 // pred_check_branch
    %71 = sbr.rel (%p69) target = $region13
  $region12: #{bce_dice_loss.1} parent=0 // pred_region
    %72 = vst [vmem:[#allocation2] sm:$0x3] 0.0
    %73 = vst [vmem:[#allocation2 + $0x2] sm:$0x3] 0.0
    %74 = vst [vmem:[#allocation3] sm:$0x3] 0.0
    %75 = vst [vmem:[#allocation3 + $0x2] sm:$0x3] 0.0
    %76 = vst [vmem:[#allocation4] sm:$0x3] 0.0
    %77 = vst [vmem:[#allocation4 + $0x2] sm:$0x3] 0.0
  $region13: #{bce_dice_loss.1} parent=0 // pred_fallthru
    _
  %v78 = vld [vmem:[%s54] sm:$0x3]
  %v79 = vld [vmem:[%s54 + $0x2] sm:$0x3]
  %v80 = vld [vmem:[%s64] sm:$0x3]
  %v81 = vld [vmem:[%s64 + $0x2] sm:$0x3]
  %vm82 = vcmp.gt.f32.partialorder %v80, 0.5
  %vm83 = vcmp.gt.f32.partialorder %v81, 0.5
  %v84 = vsub.f32 1.0, %v78
  %v85 = vsub.f32 1.0, %v79
  %v86 = vsel %vm82, %v78, %v84
  %v87 = vsel %vm83, %v79, %v85
  %v88 = vlog2.pop %v86
  %v89 = vmul.f32 %v88, 0.6931472
  %v90 = vlog2.pop %v87
  %v91 = vmul.f32 %v90, 0.6931472
  %v92 = vmax.f32 %v89, -100.0
  %v93 = vmax.f32 %v91, -100.0
  %v94 = vmul.f32 %v78, %v78
  %v95 = vmul.f32 %v79, %v79
  %v96 = vadd.f32 %v94, %v80
  %v97 = vadd.f32 %v95, %v81
  %v98 = vld [vmem:[#allocation2] sm:$0x3]
  %v99 = vld [vmem:[#allocation2 + $0x2] sm:$0x3]
  %v100 = vadd.f32 %v98, %v92
  %v101 = vadd.f32 %v99, %v93
  %102 = vst [vmem:[#allocation2] sm:$0x3] %v100
  %103 = vst [vmem:[#allocation2 + $0x2] sm:$0x3] %v101
  %v104 = vld [vmem:[#allocation3] sm:$0x3]
  %v105 = vld [vmem:[#allocation3 + $0x2] sm:$0x3]
  %v106 = vmul.f32 %v78, %v80
  %v107 = vmul.f32 %v79, %v81
  %v108 = vadd.f32 %v104, %v106
  %v109 = vadd.f32 %v105, %v107
  %110 = vst [vmem:[#allocation3] sm:$0x3] %v108
  %111 = vst [vmem:[#allocation3 + $0x2] sm:$0x3] %v109
  %v112 = vld [vmem:[#allocation4] sm:$0x3]
  %v113 = vld [vmem:[#allocation4 + $0x2] sm:$0x3]
  %v114 = vadd.f32 %v112, %v96
  %v115 = vadd.f32 %v113, %v97
  %116 = vst [vmem:[#allocation4] sm:$0x3] %v114
  %117 = vst [vmem:[#allocation4 + $0x2] sm:$0x3] %v115
  // Predicated region
  $region14: #{bce_dice_loss.1} parent=0 // pred_check
    %p118 = pneg %p68
  $region15: #{bce_dice_loss.1} parent=0 // pred_check_branch
    %120 = sbr.rel (%p118) target = $region17
  $region16: #{bce_dice_loss.1} parent=0 // pred_region
    %v121 = vld [vmem:[#allocation2] sm:$0x3]
    %v122 = vld [vmem:[#allocation2 + $0x2] sm:$0x3]
    %vm123 = vcmask 1041408
    %v124 = vsel %vm123, %v121, 0.0
    %v125 = vrot.slane %v124, 4
    %v126 = vadd.f32 %v124, %v125
    %v127 = vrot.slane %v126, 2
    %v128 = vadd.f32 %v126, %v127
    %v129 = vrot.slane %v128, 1
    %v130 = vadd.f32 %v128, %v129
    %v131 = vsel %vm123, %v122, 0.0
    %v132 = vrot.slane %v131, 4
    %v133 = vadd.f32 %v131, %v132
    %v134 = vrot.slane %v133, 2
    %v135 = vadd.f32 %v133, %v134
    %v136 = vrot.slane %v135, 1
    %v137 = vadd.f32 %v135, %v136
    %138 = vst [vmem:[%s2] sm:$0x1] %v130
    %139 = vst [vmem:[%s2 + $0x1] sm:$0x1] %v137
    %v140 = vld [vmem:[#allocation3] sm:$0x3]
    %v141 = vld [vmem:[#allocation3 + $0x2] sm:$0x3]
    %v142 = vsel %vm123, %v140, 0.0
    %v143 = vrot.slane %v142, 4
    %v144 = vadd.f32 %v142, %v143
    %v145 = vrot.slane %v144, 2
    %v146 = vadd.f32 %v144, %v145
    %v147 = vrot.slane %v146, 1
    %v148 = vadd.f32 %v146, %v147
    %v149 = vsel %vm123, %v141, 0.0
    %v150 = vrot.slane %v149, 4
    %v151 = vadd.f32 %v149, %v150
    %v152 = vrot.slane %v151, 2
    %v153 = vadd.f32 %v151, %v152
    %v154 = vrot.slane %v153, 1
    %v155 = vadd.f32 %v153, %v154
    %156 = vst [vmem:[%s3] sm:$0x1] %v148
    %157 = vst [vmem:[%s3 + $0x1] sm:$0x1] %v155
    %v158 = vld [vmem:[#allocation4] sm:$0x3]
    %v159 = vld [vmem:[#allocation4 + $0x2] sm:$0x3]
    %v160 = vsel %vm123, %v158, 0.0
    %v161 = vrot.slane %v160, 4
    %v162 = vadd.f32 %v160, %v161
    %v163 = vrot.slane %v162, 2
    %v164 = vadd.f32 %v162, %v163
    %v165 = vrot.slane %v164, 1
    %v166 = vadd.f32 %v164, %v165
    %v167 = vsel %vm123, %v159, 0.0
    %v168 = vrot.slane %v167, 4
    %v169 = vadd.f32 %v167, %v168
    %v170 = vrot.slane %v169, 2
    %v171 = vadd.f32 %v169, %v170
    %v172 = vrot.slane %v171, 1
    %v173 = vadd.f32 %v171, %v172
    %174 = vst [vmem:[%s4] sm:$0x1] %v166
    %175 = vst [vmem:[%s4 + $0x1] sm:$0x1] %v173
  $region17: #{bce_dice_loss.1} parent=0 // pred_fallthru
    _
  // Predicated region
  $region18: #{bce_dice_loss.1} parent=0 // pred_check
    _
  $region19: #{bce_dice_loss.1} parent=0 // pred_check_branch
    %177 = sbr.rel (0) target = $region21
  $region20: #{bce_dice_loss.1} parent=0 // pred_region
    _
  $region21: #{bce_dice_loss.1} parent=0 // pred_fallthru
    _
  // Predicated region
  $region22: #{bce_dice_loss.1} parent=0 // pred_check
    _
  $region23: #{bce_dice_loss.1} parent=0 // pred_check_branch
    %179 = sbr.rel (0) target = $region25
  $region24: #{bce_dice_loss.1} parent=0 // pred_region
    _
  $region25: #{bce_dice_loss.1} parent=0 // pred_fallthru
    _
  // Predicated region
  $region26: #{bce_dice_loss.1} parent=0 // pred_check
    _
  $region27: #{bce_dice_loss.1} parent=0 // pred_check_branch
    %181 = sbr.rel (0) target = $region29
  $region28: #{bce_dice_loss.1} parent=0 // pred_region
    _
  $region29: #{bce_dice_loss.1} parent=0 // pred_fallthru
    _
  // Predicated region
  $region30: #{bce_dice_loss.1} parent=0 // pred_check
    _
  $region31: #{bce_dice_loss.1} parent=0 // pred_check_branch
    %183 = sbr.rel (0) target = $region33
  $region32: #{bce_dice_loss.1} parent=0 // pred_region
    _
  $region33: #{bce_dice_loss.1} parent=0 // pred_fallthru
    _
  // Predicated region
  $region34: #{bce_dice_loss.1} parent=0 // pred_check
    _
  $region35: #{bce_dice_loss.1} parent=0 // pred_check_branch
    %185 = sbr.rel (0) target = $region37
  $region36: #{bce_dice_loss.1} parent=0 // pred_region
    _
  $region37: #{bce_dice_loss.1} parent=0 // pred_fallthru
    _
  // Predicated region
  $region38: #{bce_dice_loss.1} parent=0 // pred_check
    _
  $region39: #{bce_dice_loss.1} parent=0 // pred_check_branch
    %187 = sbr.rel (0) target = $region41
  $region40: #{bce_dice_loss.1} parent=0 // pred_region
    _
  $region41: #{bce_dice_loss.1} parent=0 // pred_fallthru
    _

</llo_original>
